<compile_context>
chip_gen: v7x
topology: tpu7x:2x2x1
jax: 0.10.0
libtpu: 0.0.40
codegen_flags: <defaults>
</compile_context>

<pallas_src>
import jax
import jax.numpy as jnp
from jax.experimental import pallas as pl
from jax.experimental.pallas import tpu as pltpu

_LANES = 128  # vreg lane width


def _round_up(x, m):
    return ((x + m - 1) // m) * m


def _min_sublanes(dtype):
    # Minimum sublane tile for the (sublane, 128) layout:
    # f32 -> 8, bf16/f16 -> 16, int8/fp8 -> 32 (sub-32-bit packs along sublanes).
    return 8 * (4 // jnp.dtype(dtype).itemsize)


def linear11_kernel(x_ref, w_ref, b_ref, o_ref):
    """y = x * w + b  (nn.Linear(1,1) == scalar FMA). Pure VPU, no MXU.

    w/b are 32-bit scalars read from SMEM; x/o tiles are lane-dense
    (block_rows, 128) slabs so every store is a full-lane unmasked vst.
    Compute in f32 (v5e VPU has no bf16), store back in the ref dtype.
    """
    x = x_ref[...].astype(jnp.float32)
    o_ref[...] = (x * w_ref[0] + b_ref[0]).astype(o_ref.dtype)


def linear_forward(x, weight, bias, *, max_block_rows=4096, min_tiles=4,
                   small_n_threshold=1 << 14, force_pallas=False):
    """Forward of nn.Linear(1, 1): x [N, 1] -> [N, 1]."""
    n, in_f = x.shape
    out_f, in_f2 = weight.shape
    assert in_f == 1 and out_f == 1 and in_f2 == 1, \
        "LinearRegressionModel uses nn.Linear(1, 1)"
    orig_dtype = x.dtype

    if n == 0:  # guard division-by-zero in the tiling math
        return jnp.zeros((0, out_f), dtype=orig_dtype)

    # Small / embedded use: let XLA fuse the trivial FMA into its neighbours
    # instead of paying a pallas_call fusion barrier + pipeline prologue.
    if n < small_n_threshold and not force_pallas:
        y = x * weight[0, 0] + bias[0]
        return y.astype(orig_dtype)

    # Scalars for SMEM (always 32-bit).
    w_s = weight.reshape(1).astype(jnp.float32)
    b_s = bias.reshape(1).astype(jnp.float32)

    # Lane-dense layout: batch -> (rows, 128), rows a multiple of the minimum
    # sublane tile. Padding and the final slice are skipped entirely when the
    # batch already lines up (the common large-batch case), so the wrapper adds
    # no extra HBM round-trips on top of the kernel's 2*N*itemsize bytes.
    sub = _min_sublanes(orig_dtype)
    rows = _round_up(pl.cdiv(n, _LANES), sub)
    padded = rows * _LANES
    needs_pad = padded != n

    flat = x.reshape(-1)
    if needs_pad:
        flat = jnp.pad(flat, (0, padded - n))
    x2d = flat.reshape(rows, _LANES)

    # Block sizing: prefer >= `min_tiles` grid steps (so the "parallel" axis
    # shards across both v7x TensorCores), capped at max_block_rows
    # (4096 rows x 128 lanes x 4 B = 2 MiB/block). The last block may be
    # partial — Pallas masks the boundary read/write.
    block_rows = min(max_block_rows, _round_up(pl.cdiv(rows, min_tiles), sub))
    n_tiles = pl.cdiv(rows, block_rows)

    out2d = pl.pallas_call(
        linear11_kernel,
        out_shape=jax.ShapeDtypeStruct((rows, _LANES), orig_dtype),
        grid=(n_tiles,),
        in_specs=[
            pl.BlockSpec((block_rows, _LANES), lambda i: (i, 0)),
            pl.BlockSpec(memory_space=pltpu.MemorySpace.SMEM),  # weight scalar
            pl.BlockSpec(memory_space=pltpu.MemorySpace.SMEM),  # bias scalar
        ],
        out_specs=pl.BlockSpec((block_rows, _LANES), lambda i: (i, 0)),
        input_output_aliases={0: 0},  # overwrite the input slab in place
        compiler_params=pltpu.CompilerParams(
            dimension_semantics=("parallel",)),
    )(x2d, w_s, b_s)

    # Restore the [N, 1] PyTorch output layout (slice only if we padded).
    if needs_pad:
        return out2d.reshape(-1)[:n].reshape(n, out_f)
    return out2d.reshape(n, out_f)


if __name__ == "__main__":
    key = jax.random.PRNGKey(0)
    kx, kw, kb, kx2 = jax.random.split(key, 4)

    IN_F, OUT_F = 1, 1
    # Deterministic parameter init (mimics nn.Linear's uniform(-1/sqrt(in), 1/sqrt(in))).
    bound = 1.0 / (IN_F ** 0.5)
    weight = jax.random.uniform(kw, (OUT_F, IN_F), minval=-bound, maxval=bound,
                                dtype=jnp.float32)
    bias = jax.random.uniform(kb, (OUT_F,), minval=-bound, maxval=bound,
                              dtype=jnp.float32)

    # (1) Spec-sized tiny batch (N=8), forced through the Pallas kernel.
    N_small = 8
    x_small = jax.random.normal(kx, (N_small, IN_F), dtype=jnp.float32)
    y_small = linear_forward(x_small, weight, bias, force_pallas=True)
    jax.block_until_ready(y_small)
    ref_small = x_small @ weight.T + bias
    assert y_small.shape == (N_small, OUT_F)
    assert jnp.allclose(y_small, ref_small, atol=1e-5, rtol=1e-5)

    # (1b) Default dispatch at tiny N uses the fused-jnp fallback (no fusion barrier).
    y_small_jnp = linear_forward(x_small, weight, bias)
    jax.block_until_ready(y_small_jnp)
    assert jnp.allclose(y_small_jnp, ref_small, atol=1e-5, rtol=1e-5)

    # (2) Larger ragged batch: exercises the pad path, multi-tile parallel grid,
    #     and a partial last block.
    N_big = 5000
    x_big = jax.random.normal(kx2, (N_big, IN_F), dtype=jnp.float32)
    y_big = linear_forward(x_big, weight, bias, force_pallas=True)
    jax.block_until_ready(y_big)
    ref_big = x_big @ weight.T + bias
    assert y_big.shape == (N_big, OUT_F)
    assert jnp.allclose(y_big, ref_big, atol=1e-5, rtol=1e-5)

    print("KERNEL_OK")
</pallas_src>

<mosaic_0001>
module attributes {stable_mosaic.version = 11 : i64} {
  func.func @linear11_kernel(%arg0: i32, %arg1: memref<8x128xf32, #tpu.memory_space<vmem>>, %arg2: memref<1xf32, #tpu.memory_space<smem>>, %arg3: memref<1xf32, #tpu.memory_space<smem>>, %arg4: memref<8x128xf32, #tpu.memory_space<vmem>>) attributes {dimension_semantics = [#tpu.dimension_semantics<parallel>], iteration_bounds = array<i64: 1>, scalar_prefetch = 0 : i64, scratch_operands = 0 : i64, tpu.core_type = #tpu.core_type<tc>, window_params = [{transform_indices = @transform_0, window_bounds = array<i64: 8, 128>}, {transform_indices = @transform_1, window_bounds = array<i64: 1>}, {transform_indices = @transform_2, window_bounds = array<i64: 1>}, {transform_indices = @transform_3, window_bounds = array<i64: 8, 128>}]} {
    %c0 = arith.constant 0 : index
    %c0_0 = arith.constant 0 : index
    %0 = vector.load %arg1[%c0, %c0_0] : memref<8x128xf32, #tpu.memory_space<vmem>>, vector<8x128xf32>
    %c0_1 = arith.constant 0 : index
    %1 = memref.load %arg2[%c0_1] : memref<1xf32, #tpu.memory_space<smem>>
    %2 = vector.broadcast %1 : f32 to vector<8x128xf32>
    %3 = arith.mulf %0, %2 : vector<8x128xf32>
    %c0_2 = arith.constant 0 : index
    %4 = memref.load %arg3[%c0_2] : memref<1xf32, #tpu.memory_space<smem>>
    %5 = vector.broadcast %4 : f32 to vector<8x128xf32>
    %6 = arith.addf %3, %5 : vector<8x128xf32>
    %c0_3 = arith.constant 0 : index
    %c0_4 = arith.constant 0 : index
    %7 = vector.load %arg4[%c0_3, %c0_4] : memref<8x128xf32, #tpu.memory_space<vmem>>, vector<8x128xf32>
    tpu.vector_store %arg4[%c0_3, %c0_4], %6 {strides = array<i32>} : memref<8x128xf32, #tpu.memory_space<vmem>>, vector<8x128xf32>,
    return
  }
  func.func @transform_0(%arg0: i32) -> (i32, i32) {
    %c0_i32 = arith.constant 0 : i32
    %c0_i32_0 = arith.constant 0 : i32
    return %arg0, %c0_i32 : i32, i32
  }
  func.func @transform_1(%arg0: i32) -> i32 {
    %c0_i32 = arith.constant 0 : i32
    %c0_i32_0 = arith.constant 0 : i32
    return %c0_i32 : i32
  }
  func.func @transform_2(%arg0: i32) -> i32 {
    %c0_i32 = arith.constant 0 : i32
    %c0_i32_0 = arith.constant 0 : i32
    return %c0_i32 : i32
  }
  func.func @transform_3(%arg0: i32) -> (i32, i32) {
    %c0_i32 = arith.constant 0 : i32
    %c0_i32_0 = arith.constant 0 : i32
    return %arg0, %c0_i32 : i32, i32
  }
}

</mosaic_0001>

<llo_original>
// kernel: tpu_custom_call.1
$region0: #{tpu_custom_call.1}
  #allocation0 [shape = 'u32[]', space=smem, size = 0x4, offset = 0x4, fixed_abs, tag = 'smem constant byte address 0x4 - core index']
  #allocation1 [shape = 'u32[144,128]{1,0:T(1,128)}', space=vmem, size = 0x12000, scoped, tag = 'internal scratch']
  #allocation2 [shape = 'f32[1]{0:T(128)S(6)}', space=smem, size = 0x200, scoped, tag = 'scoped memory for tpu_custom_call.1']
  #allocation3 [shape = 'f32[1]{0:T(128)S(6)}', space=smem, size = 0x200, scoped, tag = 'scoped memory for tpu_custom_call.1']
  %s0 = inlined_call_operand.hbm [shape: f32[8,128], index: 0, kind: input, shape index: {}, may-alias: {0,3}]
  %s1 = inlined_call_operand.<no memory space> [shape: f32[1], index: 1, kind: input, shape index: {}]
  %s2 = inlined_call_operand.<no memory space> [shape: f32[1], index: 2, kind: input, shape index: {}]
  %s3 = inlined_call_operand.hbm [shape: f32[8,128], index: 3, kind: output, shape index: {}, may-alias: {0,3}]
  %s4 = sld [smem:[#allocation0]]
  $region26: #{tpu_custom_call.1} parent=0
    _
  %s6 = ssub.s32 1, %s4
  %s7 = scalar_select 0, %s6, %s4
  %8 = sst [smem:[#allocation2]] %s1
  %9 = sst [smem:[#allocation3]] %s2
  $region1: #{tpu_custom_call.1} parent=0
    #allocation4 [shape = 'u8[4096]{0}', space=vmem, size = 0x1000, scoped, tag = 'input window, operand 0, single buffered']
    #allocation5 [shape = 's32[1]{0}', space=sflag, size = 0x4, scoped, tag = 'scoped memory for tpu_custom_call.1']
    #allocation6 [shape = 's32[1]{0}', space=sflag, size = 0x4, scoped, tag = 'scoped memory for tpu_custom_call.1']
    #allocation7 [shape = 'u8[4096]{0}', space=vmem, size = 0x1000, scoped, tag = 'output window, operand 0, single buffered']
    %10 = vsyncpa [#allocation5], 0
    %11 = vsyncpa [#allocation6], 0
    // Predicated region
    $region2: #{tpu_custom_call.1} parent=1 // pred_check
      _
    $region3: #{tpu_custom_call.1} parent=1 // pred_check_branch
      %13 = sbr.rel (0) target = $region5
    $region4: #{tpu_custom_call.1} parent=1 // pred_region
      %s15 = ssub.s32 128, 128
      %16 = vsyncadd [#allocation5], %s15
      %s18 = sshll.u32 [#allocation4], 4
      %s19 = int_to_ptr.vmem [resolvable:$true] %s18
      %21 = dma.hbm_to_vmem [thread:$0]  %s0, 128, %s19, [#allocation5]
    $region5: #{tpu_custom_call.1} parent=1 // pred_fallthru
      _
    // Predicated region
    $region6: #{tpu_custom_call.1} parent=1 // pred_check
      _
    $region7: #{tpu_custom_call.1} parent=1 // pred_check_branch
      %23 = sbr.rel (0) target = $region9
    $region8: #{tpu_custom_call.1} parent=1 // pred_region
      _
    $region9: #{tpu_custom_call.1} parent=1 // pred_fallthru
      _
    // Predicated region
    $region10: #{tpu_custom_call.1} parent=1 // pred_check
      _
    $region11: #{tpu_custom_call.1} parent=1 // pred_check_branch
      %25 = sbr.rel (0) target = $region13
    $region12: #{tpu_custom_call.1} parent=1 // pred_region
      _
    $region13: #{tpu_custom_call.1} parent=1 // pred_fallthru
      _
    // Predicated region
    $region14: #{tpu_custom_call.1} parent=1 // pred_check
      _
    $region15: #{tpu_custom_call.1} parent=1 // pred_check_branch
      %27 = sbr.rel (0) target = $region17
    $region16: #{tpu_custom_call.1} parent=1 // pred_region
      %28 = dma.done [#allocation5], 128
    $region17: #{tpu_custom_call.1} parent=1 // pred_fallthru
      _
    %v29 = vld [vmem:[#allocation4] sm:$0xff]
    %s30 = sld [smem:[#allocation2]]
    %v31 = vstv %s30
    %v32 = vmul.f32 %v29, %v31
    %s33 = sld [smem:[#allocation3]]
    %v34 = vstv %s33
    %v35 = vadd.f32 %v32, %v34
    %36 = vst [vmem:[#allocation7] sm:$0xff] %v35
    // Predicated region
    $region18: #{tpu_custom_call.1} parent=1 // pred_check
      _
    $region19: #{tpu_custom_call.1} parent=1 // pred_check_branch
      %38 = sbr.rel (0) target = $region21
    $region20: #{tpu_custom_call.1} parent=1 // pred_region
      %s40 = ssub.s32 128, 128
      %41 = vsyncadd [#allocation6], %s40
      %s43 = sshll.u32 [#allocation7], 4
      %s44 = int_to_ptr.vmem [resolvable:$true] %s43
      %46 = dma.vmem_to_hbm [thread:$0]  %s44, 128, %s3, [#allocation6]
    $region21: #{tpu_custom_call.1} parent=1 // pred_fallthru
      _
    // Predicated region
    $region22: #{tpu_custom_call.1} parent=1 // pred_check
      _
    $region23: #{tpu_custom_call.1} parent=1 // pred_check_branch
      %48 = sbr.rel (0) target = $region25
    $region24: #{tpu_custom_call.1} parent=1 // pred_region
      %49 = dma.done [#allocation6], 128
    $region25: #{tpu_custom_call.1} parent=1 // pred_fallthru
      _
    %50 = vsyncpa [#allocation5], 1
    %51 = vsyncpa [#allocation6], 1

</llo_original>
